<compile_context>
chip_gen: v7x
topology: tpu7x:2x2x1
jax: 0.10.0
libtpu: 0.0.40
codegen_flags: <defaults>
</compile_context>

<pallas_src>
import math
import functools

import jax
import jax.numpy as jnp
import numpy as np
from jax import lax
from jax.experimental import pallas as pl
from jax.experimental.pallas import tpu as pltpu

_NEG_BIG = -1e30  # finite mask sentinel (avoids exp(-inf - -inf) NaN)


def _vmem_limit_bytes():
    """Generation-aware VMEM budget: ~100 MiB on 128-MiB parts (v5e/v6e),
    ~48 MiB on the 64-MiB-per-TC v7x, conservative fallback if query fails."""
    phys = None
    try:
        info = pltpu.get_tpu_info()
        phys = getattr(info, "vmem_capacity_bytes", None)
    except Exception:
        phys = None
    if not phys:
        phys = 64 * 1024 * 1024
    return int(max(32 * 1024 * 1024,
                   min(phys - 16 * 1024 * 1024, 100 * 1024 * 1024)))


# ---------------------------------------------------------------------------
# Stage 1: qkv projection -> lane-dense (B, T, C) q / k / v
# ---------------------------------------------------------------------------
def _qkv_proj_kernel(x_ref, wq_ref, wk_ref, wv_ref, bq_ref, bk_ref, bv_ref,
                     q_ref, k_ref, v_ref):
    # x_ref: (1, TM, C) f32   w*_ref: (C, TN) bf16   b*_ref: (1, TN) f32
    # q/k/v_ref: (1, TM, TN) bf16
    x = x_ref[0].astype(jnp.bfloat16)                                   # (TM, C)
    q = jnp.dot(x, wq_ref[...], preferred_element_type=jnp.float32) + bq_ref[...]
    k = jnp.dot(x, wk_ref[...], preferred_element_type=jnp.float32) + bk_ref[...]
    v = jnp.dot(x, wv_ref[...], preferred_element_type=jnp.float32) + bv_ref[...]
    q_ref[0] = q.astype(q_ref.dtype)
    k_ref[0] = k.astype(k_ref.dtype)
    v_ref[0] = v.astype(v_ref.dtype)


# ---------------------------------------------------------------------------
# Stage 2: flash attention over a flattened lower-triangular (i, j<=i) grid
# ---------------------------------------------------------------------------
def _flash_attn_kernel(i_of_ref, j_of_ref, q_ref, k_ref, v_ref, o_ref,
                       m_scr, l_scr, acc_scr, *, n_head, head_dim):
    # i_of/j_of: (n_tri,) int32 SMEM (scalar-prefetched tile schedule)
    # q_ref:     (1, TQ, C) bf16    k_ref/v_ref: (1, TK, C) bf16
    # o_ref:     (1, TQ, C) bf16
    # scratch:   m/l (H, TQ, 1) f32, acc (H, TQ, D) f32
    t = pl.program_id(1)
    i = i_of_ref[t]          # query tile index
    j = j_of_ref[t]          # kv tile index (j <= i by construction)

    @pl.when(j == 0)
    def _init():
        m_scr[...] = jnp.full(m_scr.shape, _NEG_BIG, m_scr.dtype)
        l_scr[...] = jnp.zeros(l_scr.shape, l_scr.dtype)
        acc_scr[...] = jnp.zeros(acc_scr.shape, acc_scr.dtype)

    def _online_softmax_step(masked: bool):
        q = q_ref[0]                                                    # (TQ, C)
        k = k_ref[0]                                                    # (TK, C)
        v = v_ref[0]                                                    # (TK, C)
        if masked:  # diagonal tiles only (TQ == TK, tile-aligned)
            tq, tk = q.shape[0], k.shape[0]
            row = lax.broadcasted_iota(jnp.int32, (tq, tk), 0)
            col = lax.broadcasted_iota(jnp.int32, (tq, tk), 1)
            causal = col <= row
        # static per-head column slices of the lane-dense tiles
        for h in range(n_head):
            lo = h * head_dim
            hi = lo + head_dim
            s = lax.dot_general(q[:, lo:hi], k[:, lo:hi],
                                (((1,), (1,)), ((), ())),
                                preferred_element_type=jnp.float32)     # (TQ, TK)
            if masked:
                s = jnp.where(causal, s, jnp.float32(_NEG_BIG))
            m_prev = m_scr[h]                                           # (TQ, 1)
            m_new = jnp.maximum(m_prev, jnp.max(s, axis=-1, keepdims=True))
            alpha = jnp.exp(m_prev - m_new)
            p = jnp.exp(s - m_new)
            l_scr[h] = alpha * l_scr[h] + jnp.sum(p, axis=-1, keepdims=True)
            acc_scr[h] = alpha * acc_scr[h] + lax.dot_general(
                p.astype(v.dtype), v[:, lo:hi], (((1,), (0,)), ((), ())),
                preferred_element_type=jnp.float32)
            m_scr[h] = m_new

    @pl.when(j < i)            # strictly-below-diagonal tiles: no mask needed
    def _off_diag():
        _online_softmax_step(masked=False)

    @pl.when(j == i)           # diagonal tile: mask, then finalize this q tile
    def _diag_and_finalize():
        _online_softmax_step(masked=True)
        for h in range(n_head):
            lo = h * head_dim
            inv_l = pl.reciprocal(l_scr[h], approx=True)                # EUP
            o_ref[0, :, lo:lo + head_dim] = (acc_scr[h] * inv_l).astype(o_ref.dtype)


# ---------------------------------------------------------------------------
# Stage 3: output projection (single K=C matmul per tile, column-tiled)
# ---------------------------------------------------------------------------
def _out_proj_kernel(ctx_ref, w_ref, b_ref, o_ref):
    # ctx_ref: (1, TM, C) bf16   w_ref: (C, TN) bf16   b_ref: (1, TN) f32
    y = jnp.dot(ctx_ref[0], w_ref[...],
                preferred_element_type=jnp.float32) + b_ref[...]
    o_ref[0] = y.astype(o_ref.dtype)


# ---------------------------------------------------------------------------
# Wrapper
# ---------------------------------------------------------------------------
def causal_self_attention(x, w_qkv, b_qkv, w_proj, b_proj, *, n_head,
                          seq_tile=256, proj_tile=256, col_tile=512):
    """x: (B, T, C) f32. Weights stored as (in, out); biases as (1, out)."""
    B, T, C = x.shape
    assert C % n_head == 0
    D = C // n_head

    # Query tile == kv tile: the causal block-skip / diagonal mask assume it.
    TQ = min(seq_tile, T)
    TM = min(proj_tile, T)
    assert T % TQ == 0 and T % TM == 0, "T must be divisible by the tile sizes"
    nq = T // TQ

    # Output-column tile for both projections: keeps only a (C, TN) weight
    # slab resident (scales to large C on v7x's 64 MiB VMEM).
    if C % col_tile == 0 and col_tile % 128 == 0:
        TN = col_tile
    else:
        TN = C
    nn = C // TN

    # Fold 1/sqrt(D) into the q projection (zero runtime cost); bf16 MXU weights.
    scale = 1.0 / math.sqrt(D)
    wq = (w_qkv[:, :C] * scale).astype(jnp.bfloat16)
    wk = w_qkv[:, C:2 * C].astype(jnp.bfloat16)
    wv = w_qkv[:, 2 * C:].astype(jnp.bfloat16)
    bq = b_qkv[:, :C] * scale
    bk = b_qkv[:, C:2 * C]
    bv = b_qkv[:, 2 * C:]
    w_proj_b = w_proj.astype(jnp.bfloat16)

    vmem_limit = _vmem_limit_bytes()

    # TODO(synk): once verified on the target jax/mosaic version, add
    # pipeline_mode=pl.Buffered(1) on the constant-index weight/bias specs and
    # pl.Buffered(3) on the stage-2 k/v specs; also consider folding stage 3
    # into the stage-2 epilogue for short-T memory-bound v5e configs.

    # ---- stage 1: qkv projection -> lane-dense (B, T, C) q/k/v (bf16) ----
    w_spec = pl.BlockSpec((C, TN), lambda b, t, n: (0, n))
    b_spec = pl.BlockSpec((1, TN), lambda b, t, n: (0, n))
    qkv_out_spec = pl.BlockSpec((1, TM, TN), lambda b, t, n: (b, t, n))
    q, k, v = pl.pallas_call(
        _qkv_proj_kernel,
        out_shape=[jax.ShapeDtypeStruct((B, T, C), jnp.bfloat16)] * 3,
        grid_spec=pltpu.PrefetchScalarGridSpec(
            num_scalar_prefetch=0,
            grid=(B, T // TM, nn),
            in_specs=[
                pl.BlockSpec((1, TM, C), lambda b, t, n: (b, t, 0)),
                w_spec, w_spec, w_spec,
                b_spec, b_spec, b_spec,
            ],
            out_specs=[qkv_out_spec, qkv_out_spec, qkv_out_spec]),
        compiler_params=pltpu.CompilerParams(
            dimension_semantics=("parallel", "parallel", "parallel"),
            vmem_limit_bytes=vmem_limit),
    )(x, wq, wk, wv, bq, bk, bv)

    # ---- stage 2: flash attention over a flattened triangular (i, j<=i) grid ----
    tri = [(ii, jj) for ii in range(nq) for jj in range(ii + 1)]
    i_of = jnp.asarray([p[0] for p in tri], dtype=jnp.int32)
    j_of = jnp.asarray([p[1] for p in tri], dtype=jnp.int32)
    n_tri = len(tri)

    def q_map(b, t, i_of_ref, j_of_ref):
        return (b, i_of_ref[t], 0)

    def kv_map(b, t, i_of_ref, j_of_ref):
        return (b, j_of_ref[t], 0)

    cost = pl.CostEstimate(
        flops=int(2 * B * T * T * C),                 # qk^T + pv, causal-halved
        transcendentals=int(B * n_head * T * T // 2),
        bytes_accessed=int(4 * B * T * C * 2))

    ctx = pl.pallas_call(
        functools.partial(_flash_attn_kernel, n_head=n_head, head_dim=D),
        out_shape=jax.ShapeDtypeStruct((B, T, C), jnp.bfloat16),
        grid_spec=pltpu.PrefetchScalarGridSpec(
            num_scalar_prefetch=2,
            grid=(B, n_tri),
            in_specs=[
                pl.BlockSpec((1, TQ, C), q_map),
                pl.BlockSpec((1, TQ, C), kv_map),
                pl.BlockSpec((1, TQ, C), kv_map),
            ],
            out_specs=pl.BlockSpec((1, TQ, C), q_map),
            scratch_shapes=[
                pltpu.VMEM((n_head, TQ, 1), jnp.float32),   # running max m
                pltpu.VMEM((n_head, TQ, 1), jnp.float32),   # running denom l
                pltpu.VMEM((n_head, TQ, D), jnp.float32),   # unnormalized context
            ]),
        compiler_params=pltpu.CompilerParams(
            dimension_semantics=("parallel", "arbitrary"),
            vmem_limit_bytes=vmem_limit),
        cost_estimate=cost,
    )(i_of, j_of, q, k, v)

    # ---- stage 3: output projection (ctx already (B, T, C), one K=C matmul) ----
    out = pl.pallas_call(
        _out_proj_kernel,
        out_shape=jax.ShapeDtypeStruct((B, T, C), x.dtype),
        grid_spec=pltpu.PrefetchScalarGridSpec(
            num_scalar_prefetch=0,
            grid=(B, T // TM, nn),
            in_specs=[
                pl.BlockSpec((1, TM, C), lambda b, t, n: (b, t, 0)),
                pl.BlockSpec((C, TN), lambda b, t, n: (0, n)),
                pl.BlockSpec((1, TN), lambda b, t, n: (0, n)),
            ],
            out_specs=pl.BlockSpec((1, TM, TN), lambda b, t, n: (b, t, n))),
        compiler_params=pltpu.CompilerParams(
            dimension_semantics=("parallel", "parallel", "parallel"),
            vmem_limit_bytes=vmem_limit),
    )(ctx, w_proj_b, b_proj)

    return out


# ---------------------------------------------------------------------------
# Pure-JAX f32 reference (mirrors the PyTorch forward)
# ---------------------------------------------------------------------------
def _reference(x, w_qkv, b_qkv, w_proj, b_proj, n_head):
    B, T, C = x.shape
    D = C // n_head
    qkv = x @ w_qkv + b_qkv[0]
    q, k, v = jnp.split(qkv, 3, axis=2)
    q = q.reshape(B, T, n_head, D).transpose(0, 2, 1, 3)
    k = k.reshape(B, T, n_head, D).transpose(0, 2, 1, 3)
    v = v.reshape(B, T, n_head, D).transpose(0, 2, 1, 3)
    scores = jnp.einsum("bhtd,bhsd->bhts", q, k) / math.sqrt(D)
    mask = jnp.tril(jnp.ones((T, T), dtype=bool))
    scores = jnp.where(mask[None, None], scores, -jnp.inf)
    attn = jax.nn.softmax(scores, axis=-1)
    y = jnp.einsum("bhts,bhsd->bhtd", attn, v)
    y = y.transpose(0, 2, 1, 3).reshape(B, T, C)
    return y @ w_proj + b_proj[0]


if __name__ == "__main__":
    # Small config consistent with the module: n_embd % n_head == 0, T <= block_size.
    B, T, C, n_head = 2, 8, 32, 4

    key = jax.random.PRNGKey(0)
    kx, k1, k2 = jax.random.split(key, 3)

    x = jax.random.normal(kx, (B, T, C), dtype=jnp.float32)
    # GPT-style init (weights ~ N(0, 0.02), biases zero), stored as (in, out).
    w_qkv = 0.02 * jax.random.normal(k1, (C, 3 * C), dtype=jnp.float32)
    b_qkv = jnp.zeros((1, 3 * C), dtype=jnp.float32)
    w_proj = 0.02 * jax.random.normal(k2, (C, C), dtype=jnp.float32)
    b_proj = jnp.zeros((1, C), dtype=jnp.float32)

    out = causal_self_attention(x, w_qkv, b_qkv, w_proj, b_proj, n_head=n_head)
    out = jax.block_until_ready(out)

    ref = _reference(x, w_qkv, b_qkv, w_proj, b_proj, n_head)
    # Tolerance reflects bf16 MXU operands (softmax stats & accumulation are f32).
    np.testing.assert_allclose(np.asarray(out), np.asarray(ref),
                               rtol=2e-2, atol=2e-3)

    print("KERNEL_OK")
</pallas_src>

<mosaic_0001>
module attributes {stable_mosaic.version = 11 : i64} {
  func.func @_qkv_proj_kernel(%arg0: i32, %arg1: i32, %arg2: i32, %arg3: memref<1x8x32xf32, #tpu.memory_space<vmem>>, %arg4: memref<32x32xbf16, #tpu.memory_space<vmem>>, %arg5: memref<32x32xbf16, #tpu.memory_space<vmem>>, %arg6: memref<32x32xbf16, #tpu.memory_space<vmem>>, %arg7: memref<1x32xf32, #tpu.memory_space<vmem>>, %arg8: memref<1x32xf32, #tpu.memory_space<vmem>>, %arg9: memref<1x32xf32, #tpu.memory_space<vmem>>, %arg10: memref<1x8x32xbf16, #tpu.memory_space<vmem>>, %arg11: memref<1x8x32xbf16, #tpu.memory_space<vmem>>, %arg12: memref<1x8x32xbf16, #tpu.memory_space<vmem>>) attributes {dimension_semantics = [#tpu.dimension_semantics<parallel>, #tpu.dimension_semantics<parallel>, #tpu.dimension_semantics<parallel>], iteration_bounds = array<i64: 2, 1, 1>, scalar_prefetch = 0 : i64, scratch_operands = 0 : i64, tpu.core_type = #tpu.core_type<tc>, window_params = [{transform_indices = @transform_0, window_bounds = array<i64: 1, 8, 32>}, {transform_indices = @transform_1, window_bounds = array<i64: 32, 32>}, {transform_indices = @transform_2, window_bounds = array<i64: 32, 32>}, {transform_indices = @transform_3, window_bounds = array<i64: 32, 32>}, {transform_indices = @transform_4, window_bounds = array<i64: 1, 32>}, {transform_indices = @transform_5, window_bounds = array<i64: 1, 32>}, {transform_indices = @transform_6, window_bounds = array<i64: 1, 32>}, {transform_indices = @transform_7, window_bounds = array<i64: 1, 8, 32>}, {transform_indices = @transform_8, window_bounds = array<i64: 1, 8, 32>}, {transform_indices = @transform_9, window_bounds = array<i64: 1, 8, 32>}]} {
    %c0 = arith.constant 0 : index
    %c0_0 = arith.constant 0 : index
    %c0_1 = arith.constant 0 : index
    %0 = vector.load %arg3[%c0, %c0_0, %c0_1] : memref<1x8x32xf32, #tpu.memory_space<vmem>>, vector<1x8x32xf32>
    %1 = vector.shape_cast %0 : vector<1x8x32xf32> to vector<8x32xf32>
    %2 = arith.truncf %1 : vector<8x32xf32> to vector<8x32xbf16>
    %c0_2 = arith.constant 0 : index
    %c0_3 = arith.constant 0 : index
    %3 = vector.load %arg4[%c0_2, %c0_3] : memref<32x32xbf16, #tpu.memory_space<vmem>>, vector<32x32xbf16>
    %cst = arith.constant dense<0.000000e+00> : vector<8x32xf32>
    %4 = tpu.matmul %2, %3, %cst {dimension_numbers = #tpu.dot_dimension_numbers<[1], [0], [0], [1], [0, 0, 1, 1], [], []>} : vector<8x32xbf16>, vector<32x32xbf16>, vector<8x32xf32> -> vector<8x32xf32>
    %c0_4 = arith.constant 0 : index
    %c0_5 = arith.constant 0 : index
    %5 = vector.load %arg7[%c0_4, %c0_5] : memref<1x32xf32, #tpu.memory_space<vmem>>, vector<1x32xf32>
    %6 = vector.broadcast %5 : vector<1x32xf32> to vector<8x32xf32>
    %7 = arith.addf %4, %6 : vector<8x32xf32>
    %c0_6 = arith.constant 0 : index
    %c0_7 = arith.constant 0 : index
    %8 = vector.load %arg5[%c0_6, %c0_7] : memref<32x32xbf16, #tpu.memory_space<vmem>>, vector<32x32xbf16>
    %cst_8 = arith.constant dense<0.000000e+00> : vector<8x32xf32>
    %9 = tpu.matmul %2, %8, %cst_8 {dimension_numbers = #tpu.dot_dimension_numbers<[1], [0], [0], [1], [0, 0, 1, 1], [], []>} : vector<8x32xbf16>, vector<32x32xbf16>, vector<8x32xf32> -> vector<8x32xf32>
    %c0_9 = arith.constant 0 : index
    %c0_10 = arith.constant 0 : index
    %10 = vector.load %arg8[%c0_9, %c0_10] : memref<1x32xf32, #tpu.memory_space<vmem>>, vector<1x32xf32>
    %11 = vector.broadcast %10 : vector<1x32xf32> to vector<8x32xf32>
    %12 = arith.addf %9, %11 : vector<8x32xf32>
    %c0_11 = arith.constant 0 : index
    %c0_12 = arith.constant 0 : index
    %13 = vector.load %arg6[%c0_11, %c0_12] : memref<32x32xbf16, #tpu.memory_space<vmem>>, vector<32x32xbf16>
    %cst_13 = arith.constant dense<0.000000e+00> : vector<8x32xf32>
    %14 = tpu.matmul %2, %13, %cst_13 {dimension_numbers = #tpu.dot_dimension_numbers<[1], [0], [0], [1], [0, 0, 1, 1], [], []>} : vector<8x32xbf16>, vector<32x32xbf16>, vector<8x32xf32> -> vector<8x32xf32>
    %c0_14 = arith.constant 0 : index
    %c0_15 = arith.constant 0 : index
    %15 = vector.load %arg9[%c0_14, %c0_15] : memref<1x32xf32, #tpu.memory_space<vmem>>, vector<1x32xf32>
    %16 = vector.broadcast %15 : vector<1x32xf32> to vector<8x32xf32>
    %17 = arith.addf %14, %16 : vector<8x32xf32>
    %18 = arith.truncf %7 : vector<8x32xf32> to vector<8x32xbf16>
    %c0_16 = arith.constant 0 : index
    %c0_17 = arith.constant 0 : index
    %c0_18 = arith.constant 0 : index
    %19 = vector.load %arg10[%c0_16, %c0_17, %c0_18] : memref<1x8x32xbf16, #tpu.memory_space<vmem>>, vector<1x8x32xbf16>
    %20 = vector.shape_cast %19 : vector<1x8x32xbf16> to vector<8x32xbf16>
    %21 = vector.shape_cast %18 : vector<8x32xbf16> to vector<1x8x32xbf16>
    tpu.vector_store %arg10[%c0_16, %c0_17, %c0_18], %21 {strides = array<i32>} : memref<1x8x32xbf16, #tpu.memory_space<vmem>>, vector<1x8x32xbf16>,
    %22 = arith.truncf %12 : vector<8x32xf32> to vector<8x32xbf16>
    %c0_19 = arith.constant 0 : index
    %c0_20 = arith.constant 0 : index
    %c0_21 = arith.constant 0 : index
    %23 = vector.load %arg11[%c0_19, %c0_20, %c0_21] : memref<1x8x32xbf16, #tpu.memory_space<vmem>>, vector<1x8x32xbf16>
    %24 = vector.shape_cast %23 : vector<1x8x32xbf16> to vector<8x32xbf16>
    %25 = vector.shape_cast %22 : vector<8x32xbf16> to vector<1x8x32xbf16>
    tpu.vector_store %arg11[%c0_19, %c0_20, %c0_21], %25 {strides = array<i32>} : memref<1x8x32xbf16, #tpu.memory_space<vmem>>, vector<1x8x32xbf16>,
    %26 = arith.truncf %17 : vector<8x32xf32> to vector<8x32xbf16>
    %c0_22 = arith.constant 0 : index
    %c0_23 = arith.constant 0 : index
    %c0_24 = arith.constant 0 : index
    %27 = vector.load %arg12[%c0_22, %c0_23, %c0_24] : memref<1x8x32xbf16, #tpu.memory_space<vmem>>, vector<1x8x32xbf16>
    %28 = vector.shape_cast %27 : vector<1x8x32xbf16> to vector<8x32xbf16>
    %29 = vector.shape_cast %26 : vector<8x32xbf16> to vector<1x8x32xbf16>
    tpu.vector_store %arg12[%c0_22, %c0_23, %c0_24], %29 {strides = array<i32>} : memref<1x8x32xbf16, #tpu.memory_space<vmem>>, vector<1x8x32xbf16>,
    return
  }
  func.func @transform_0(%arg0: i32, %arg1: i32, %arg2: i32) -> (i32, i32, i32) {
    %c0_i32 = arith.constant 0 : i32
    %c0_i32_0 = arith.constant 0 : i32
    return %arg0, %arg1, %c0_i32 : i32, i32, i32
  }
  func.func @transform_1(%arg0: i32, %arg1: i32, %arg2: i32) -> (i32, i32) {
    %c0_i32 = arith.constant 0 : i32
    %c0_i32_0 = arith.constant 0 : i32
    return %c0_i32, %arg2 : i32, i32
  }
  func.func @transform_2(%arg0: i32, %arg1: i32, %arg2: i32) -> (i32, i32) {
    %c0_i32 = arith.constant 0 : i32
    %c0_i32_0 = arith.constant 0 : i32
    return %c0_i32, %arg2 : i32, i32
  }
  func.func @transform_3(%arg0: i32, %arg1: i32, %arg2: i32) -> (i32, i32) {
    %c0_i32 = arith.constant 0 : i32
    %c0_i32_0 = arith.constant 0 : i32
    return %c0_i32, %arg2 : i32, i32
  }
  func.func @transform_4(%arg0: i32, %arg1: i32, %arg2: i32) -> (i32, i32) {
    %c0_i32 = arith.constant 0 : i32
    %c0_i32_0 = arith.constant 0 : i32
    return %c0_i32, %arg2 : i32, i32
  }
  func.func @transform_5(%arg0: i32, %arg1: i32, %arg2: i32) -> (i32, i32) {
    %c0_i32 = arith.constant 0 : i32
    %c0_i32_0 = arith.constant 0 : i32
    return %c0_i32, %arg2 : i32, i32
  }
  func.func @transform_6(%arg0: i32, %arg1: i32, %arg2: i32) -> (i32, i32) {
    %c0_i32 = arith.constant 0 : i32
    %c0_i32_0 = arith.constant 0 : i32
    return %c0_i32, %arg2 : i32, i32
  }
  func.func @transform_7(%arg0: i32, %arg1: i32, %arg2: i32) -> (i32, i32, i32) {
    %c0_i32 = arith.constant 0 : i32
    return %arg0, %arg1, %arg2 : i32, i32, i32
  }
  func.func @transform_8(%arg0: i32, %arg1: i32, %arg2: i32) -> (i32, i32, i32) {
    %c0_i32 = arith.constant 0 : i32
    return %arg0, %arg1, %arg2 : i32, i32, i32
  }
  func.func @transform_9(%arg0: i32, %arg1: i32, %arg2: i32) -> (i32, i32, i32) {
    %c0_i32 = arith.constant 0 : i32
    return %arg0, %arg1, %arg2 : i32, i32, i32
  }
}

</mosaic_0001>

<llo_original>
// kernel: tpu_custom_call.1
$region0: #{tpu_custom_call.1}
  #allocation0 [shape = 'u32[]', space=smem, size = 0x4, offset = 0x4, fixed_abs, tag = 'smem constant byte address 0x4 - core index']
  #allocation1 [shape = 'u32[144,128]{1,0:T(1,128)}', space=vmem, size = 0x12000, scoped, tag = 'internal scratch']
  %s0 = inlined_call_operand.hbm [shape: f32[2,8,32], index: 0, kind: input, shape index: {}]
  %s1 = inlined_call_operand.hbm [shape: bf16[32,32], index: 1, kind: input, shape index: {}]
  %s2 = inlined_call_operand.hbm [shape: bf16[32,32], index: 2, kind: input, shape index: {}]
  %s3 = inlined_call_operand.hbm [shape: bf16[32,32], index: 3, kind: input, shape index: {}]
  %s4 = inlined_call_operand.vmem [shape: f32[1,32], index: 4, kind: input, shape index: {}]
  %s5 = inlined_call_operand.vmem [shape: f32[1,32], index: 5, kind: input, shape index: {}]
  %s6 = inlined_call_operand.vmem [shape: f32[1,32], index: 6, kind: input, shape index: {}]
  %s7 = inlined_call_operand.hbm [shape: bf16[2,8,32], index: 7, kind: output, shape index: {0}]
  %s8 = inlined_call_operand.hbm [shape: bf16[2,8,32], index: 8, kind: output, shape index: {1}]
  %s9 = inlined_call_operand.hbm [shape: bf16[2,8,32], index: 9, kind: output, shape index: {2}]
  %10 = xla_tuple %s7, %s8, %s9
  %s11 = sld [smem:[#allocation0]]
  $region93: #{tpu_custom_call.1} parent=0
    _
  %s13 = ssub.s32 1, %s11
  %s14 = scalar_select 0, %s13, %s11
  $region1: #{tpu_custom_call.1} parent=0
    #allocation2 [shape = 'u8[8192]{0}', space=vmem, size = 0x2000, scoped, tag = 'input window, operand 0']
    #allocation3 [shape = 's32[2]{0}', space=sflag, size = 0x8, scoped, tag = 'scoped memory for tpu_custom_call.1']
    #allocation4 [shape = 's32[2]{0}', space=sflag, size = 0x8, scoped, tag = 'scoped memory for tpu_custom_call.1']
    #allocation5 [shape = 'u8[8192]{0}', space=vmem, size = 0x2000, scoped, tag = 'input window, operand 1, single buffered']
    #allocation6 [shape = 's32[1]{0}', space=sflag, size = 0x4, scoped, tag = 'scoped memory for tpu_custom_call.1']
    #allocation7 [shape = 'u8[8192]{0}', space=vmem, size = 0x2000, scoped, tag = 'input window, operand 2, single buffered']
    #allocation8 [shape = 'u8[8192]{0}', space=vmem, size = 0x2000, scoped, tag = 'input window, operand 3, single buffered']
    #allocation9 [shape = 's32[1]{0}', space=sflag, size = 0x4, scoped, tag = 'scoped memory for tpu_custom_call.1']
    #allocation10 [shape = 'u8[4096]{0}', space=vmem, size = 0x1000, scoped, tag = 'output window, operand 0']
    #allocation11 [shape = 'u8[4096]{0}', space=vmem, size = 0x1000, scoped, tag = 'output window, operand 1']
    #allocation12 [shape = 's32[2]{0}', space=sflag, size = 0x8, scoped, tag = 'scoped memory for tpu_custom_call.1']
    #allocation13 [shape = 'u8[4096]{0}', space=vmem, size = 0x1000, scoped, tag = 'output window, operand 2']
    %15 = vsyncpa [#allocation3], 0
    %s16 = scalar_lea.sflag [#allocation3], 1
    %17 = vsyncpa %s16, 0
    %18 = vsyncpa [#allocation6], 0
    %19 = vsyncpa [#allocation9], 0
    %20 = vsyncpa [#allocation4], 0
    %s21 = scalar_lea.sflag [#allocation4], 1
    %22 = vsyncpa %s21, 0
    %23 = vsyncpa [#allocation12], 0
    %s24 = scalar_lea.sflag [#allocation12], 1
    %25 = vsyncpa %s24, 0
    loop: start=0, step=1, limit=4
    $region2: #{tpu_custom_call.1} parent=1 // loop_pre_header
      _
    $region3: #{tpu_custom_call.1} parent=1 // loop_header
      %s27 = sphi 0, %s31
      %p28 = scmp.ge.s32.totalorder %s27, 4
      %s34 = sphi 0, %s53
      %s35 = sphi 0, %s49
      %s36 = sphi 0, %s45
      %s37 = sphi 0, %s34
      %s38 = sphi 0, %s35
      %s39 = sphi 0, %s36
      %s40 = sphi 0, %s37
      %s41 = sphi 0, %s38
      %s42 = sphi 0, %s39
      %s58 = sphi 0, %s60
      %s61 = sphi 0, %s58
      %s62 = sphi 0, %s61
      %s78 = sphi 0, %s62
      %s84 = sphi 0, %s86
      %s87 = sphi 0, %s84
      %s88 = sphi 0, %s87
      %s104 = sphi 0, %s88
      %s110 = sphi 0, %s112
      %s113 = sphi 0, %s110
      %s114 = sphi 0, %s113
      %s130 = sphi 0, %s114
      %s136 = sphi 0, %s138
      %s139 = sphi 0, %s136
      %s140 = sphi 0, %s139
      %s156 = sphi 0, %s140
      %s162 = sphi 0, %s164
      %s165 = sphi 0, %s162
      %s166 = sphi 0, %s165
      %s182 = sphi 0, %s166
      %s188 = sphi 0, %s190
      %s191 = sphi 0, %s188
      %s192 = sphi 0, %s191
      %s208 = sphi 0, %s192
      %s214 = sphi 0, %s216
      %s217 = sphi 0, %s214
      %s218 = sphi 0, %s217
      %s234 = sphi 0, %s218
      %s244 = sphi 0, %s246
      %s247 = sphi 0, %s244
      %s248 = sphi 0, %s247
      %s264 = sphi 0, %s248
      %s274 = sphi 0, %s276
      %s277 = sphi 0, %s274
      %s278 = sphi 0, %s277
      %s294 = sphi 0, %s278
      %s304 = sphi 0, %s306
      %s307 = sphi 0, %s304
      %s308 = sphi 0, %s307
      %s324 = sphi 0, %s308
    $region4: #{tpu_custom_call.1} parent=1 // loop_header_branch
      %30 = sbr.rel (%p28) target = $region8
    $region5: #{tpu_custom_call.1} parent=1 // loop_body
      %s32 = ssub.s32 %s27, 1
      %s33 = ssub.s32 %s27, 2
      %s43 = sadd.s32 1, %s36
      %p44 = scmp.ge.s32.totalorder %s43, 1
      %s45 = scalar_select %p44, 0, %s43
      %s46 = sadd.s32 1, %s35
      %s47 = scalar_select %p44, %s46, %s35
      %p48 = scmp.ge.s32.totalorder %s47, 1
      %s49 = scalar_select %p48, 0, %s47
      %s50 = sadd.s32 1, %s34
      %s51 = scalar_select %p48, %s50, %s34
      %p52 = scmp.ge.s32.totalorder %s51, 2
      %s53 = scalar_select %p52, 0, %s51
      %s54 = ssub.s32 %s34, %s53
      %s55 = ssub.s32 %s35, %s49
      %s56 = sor.u32 %s54, %s55
      %p57 = scmp.eq.s32.totalorder %s56, 0
      %s59 = sadd.s32 %s58, 1
      %s60 = scalar_select %p57, %s58, %s59
      %p63 = pneg %p57
      %p64 = scmp.eq.s32.totalorder %s27, 1
      %p65 = por %p63, %p64
      %p66 = scmp.ne.s32.totalorder %s58, %s61
      %p67 = scmp.eq.s32.totalorder %s27, 0
      %p68 = por %p66, %p67
      %p69 = scmp.ne.s32.totalorder %s58, %s61
      %p70 = scmp.eq.s32.totalorder %s32, 1
      %p71 = por %p69, %p70
      %p72 = scmp.ne.s32.totalorder %s61, %s62
      %p73 = scmp.eq.s32.totalorder %s32, 0
      %p74 = por %p72, %p73
      %p75 = scmp.ne.s32.totalorder %s61, %s62
      %p76 = scmp.eq.s32.totalorder %s33, 1
      %p77 = por %p75, %p76
      %p79 = scmp.ne.s32.totalorder %s62, %s78
      %p80 = scmp.eq.s32.totalorder %s33, 0
      %p81 = por %p79, %p80
      %s82 = ssub.s32 %s36, %s45
      %p83 = scmp.eq.s32.totalorder %s82, 0
      %s85 = sadd.s32 %s84, 1
      %s86 = scalar_select %p83, %s84, %s85
      %p89 = pneg %p83
      %p90 = scmp.eq.s32.totalorder %s27, 1
      %p91 = por %p89, %p90
      %p92 = scmp.ne.s32.totalorder %s84, %s87
      %p93 = scmp.eq.s32.totalorder %s27, 0
      %p94 = por %p92, %p93
      %p95 = scmp.ne.s32.totalorder %s84, %s87
      %p96 = scmp.eq.s32.totalorder %s32, 1
      %p97 = por %p95, %p96
      %p98 = scmp.ne.s32.totalorder %s87, %s88
      %p99 = scmp.eq.s32.totalorder %s32, 0
      %p100 = por %p98, %p99
      %p101 = scmp.ne.s32.totalorder %s87, %s88
      %p102 = scmp.eq.s32.totalorder %s33, 1
      %p103 = por %p101, %p102
      %p105 = scmp.ne.s32.totalorder %s88, %s104
      %p106 = scmp.eq.s32.totalorder %s33, 0
      %p107 = por %p105, %p106
      %s108 = ssub.s32 %s36, %s45
      %p109 = scmp.eq.s32.totalorder %s108, 0
      %s111 = sadd.s32 %s110, 1
      %s112 = scalar_select %p109, %s110, %s111
      %p115 = pneg %p109
      %p116 = scmp.eq.s32.totalorder %s27, 1
      %p117 = por %p115, %p116
      %p118 = scmp.ne.s32.totalorder %s110, %s113
      %p119 = scmp.eq.s32.totalorder %s27, 0
      %p120 = por %p118, %p119
      %p121 = scmp.ne.s32.totalorder %s110, %s113
      %p122 = scmp.eq.s32.totalorder %s32, 1
      %p123 = por %p121, %p122
      %p124 = scmp.ne.s32.totalorder %s113, %s114
      %p125 = scmp.eq.s32.totalorder %s32, 0
      %p126 = por %p124, %p125
      %p127 = scmp.ne.s32.totalorder %s113, %s114
      %p128 = scmp.eq.s32.totalorder %s33, 1
      %p129 = por %p127, %p128
      %p131 = scmp.ne.s32.totalorder %s114, %s130
      %p132 = scmp.eq.s32.totalorder %s33, 0
      %p133 = por %p131, %p132
      %s134 = ssub.s32 %s36, %s45
      %p135 = scmp.eq.s32.totalorder %s134, 0
      %s137 = sadd.s32 %s136, 1
      %s138 = scalar_select %p135, %s136, %s137
      %p141 = pneg %p135
      %p142 = scmp.eq.s32.totalorder %s27, 1
      %p143 = por %p141, %p142
      %p144 = scmp.ne.s32.totalorder %s136, %s139
      %p145 = scmp.eq.s32.totalorder %s27, 0
      %p146 = por %p144, %p145
      %p147 = scmp.ne.s32.totalorder %s136, %s139
      %p148 = scmp.eq.s32.totalorder %s32, 1
      %p149 = por %p147, %p148
      %p150 = scmp.ne.s32.totalorder %s139, %s140
      %p151 = scmp.eq.s32.totalorder %s32, 0
      %p152 = por %p150, %p151
      %p153 = scmp.ne.s32.totalorder %s139, %s140
      %p154 = scmp.eq.s32.totalorder %s33, 1
      %p155 = por %p153, %p154
      %p157 = scmp.ne.s32.totalorder %s140, %s156
      %p158 = scmp.eq.s32.totalorder %s33, 0
      %p159 = por %p157, %p158
      %s160 = ssub.s32 %s36, %s45
      %p161 = scmp.eq.s32.totalorder %s160, 0
      %s163 = sadd.s32 %s162, 1
      %s164 = scalar_select %p161, %s162, %s163
      %p167 = pneg %p161
      %p168 = scmp.eq.s32.totalorder %s27, 1
      %p169 = por %p167, %p168
      %p170 = scmp.ne.s32.totalorder %s162, %s165
      %p171 = scmp.eq.s32.totalorder %s27, 0
      %p172 = por %p170, %p171
      %p173 = scmp.ne.s32.totalorder %s162, %s165
      %p174 = scmp.eq.s32.totalorder %s32, 1
      %p175 = por %p173, %p174
      %p176 = scmp.ne.s32.totalorder %s165, %s166
      %p177 = scmp.eq.s32.totalorder %s32, 0
      %p178 = por %p176, %p177
      %p179 = scmp.ne.s32.totalorder %s165, %s166
      %p180 = scmp.eq.s32.totalorder %s33, 1
      %p181 = por %p179, %p180
      %p183 = scmp.ne.s32.totalorder %s166, %s182
      %p184 = scmp.eq.s32.totalorder %s33, 0
      %p185 = por %p183, %p184
      %s186 = ssub.s32 %s36, %s45
      %p187 = scmp.eq.s32.totalorder %s186, 0
      %s189 = sadd.s32 %s188, 1
      %s190 = scalar_select %p187, %s188, %s189
      %p193 = pneg %p187
      %p194 = scmp.eq.s32.totalorder %s27, 1
      %p195 = por %p193, %p194
      %p196 = scmp.ne.s32.totalorder %s188, %s191
      %p197 = scmp.eq.s32.totalorder %s27, 0
      %p198 = por %p196, %p197
      %p199 = scmp.ne.s32.totalorder %s188, %s191
      %p200 = scmp.eq.s32.totalorder %s32, 1
      %p201 = por %p199, %p200
      %p202 = scmp.ne.s32.totalorder %s191, %s192
      %p203 = scmp.eq.s32.totalorder %s32, 0
      %p204 = por %p202, %p203
      %p205 = scmp.ne.s32.totalorder %s191, %s192
      %p206 = scmp.eq.s32.totalorder %s33, 1
      %p207 = por %p205, %p206
      %p209 = scmp.ne.s32.totalorder %s192, %s208
      %p210 = scmp.eq.s32.totalorder %s33, 0
      %p211 = por %p209, %p210
      %s212 = ssub.s32 %s36, %s45
      %p213 = scmp.eq.s32.totalorder %s212, 0
      %s215 = sadd.s32 %s214, 1
      %s216 = scalar_select %p213, %s214, %s215
      %p219 = pneg %p213
      %p220 = scmp.eq.s32.totalorder %s27, 1
      %p221 = por %p219, %p220
      %p222 = scmp.ne.s32.totalorder %s214, %s217
      %p223 = scmp.eq.s32.totalorder %s27, 0
      %p224 = por %p222, %p223
      %p225 = scmp.ne.s32.totalorder %s214, %s217
      %p226 = scmp.eq.s32.totalorder %s32, 1
      %p227 = por %p225, %p226
      %p228 = scmp.ne.s32.totalorder %s217, %s218
      %p229 = scmp.eq.s32.totalorder %s32, 0
      %p230 = por %p228, %p229
      %p231 = scmp.ne.s32.totalorder %s217, %s218
      %p232 = scmp.eq.s32.totalorder %s33, 1
      %p233 = por %p231, %p232
      %p235 = scmp.ne.s32.totalorder %s218, %s234
      %p236 = scmp.eq.s32.totalorder %s33, 0
      %p237 = por %p235, %p236
      %s238 = ssub.s32 %s34, %s53
      %s239 = ssub.s32 %s35, %s49
      %s240 = sor.u32 %s238, %s239
      %s241 = ssub.s32 %s36, %s45
      %s242 = sor.u32 %s240, %s241
      %p243 = scmp.eq.s32.totalorder %s242, 0
      %s245 = sadd.s32 %s244, 1
      %s246 = scalar_select %p243, %s244, %s245
      %p249 = pneg %p243
      %p250 = scmp.eq.s32.totalorder %s27, 1
      %p251 = por %p249, %p250
      %p252 = scmp.ne.s32.totalorder %s244, %s247
      %p253 = scmp.eq.s32.totalorder %s27, 0
      %p254 = por %p252, %p253
      %p255 = scmp.ne.s32.totalorder %s244, %s247
      %p256 = scmp.eq.s32.totalorder %s32, 1
      %p257 = por %p255, %p256
      %p258 = scmp.ne.s32.totalorder %s247, %s248
      %p259 = scmp.eq.s32.totalorder %s32, 0
      %p260 = por %p258, %p259
      %p261 = scmp.ne.s32.totalorder %s247, %s248
      %p262 = scmp.eq.s32.totalorder %s33, 1
      %p263 = por %p261, %p262
      %p265 = scmp.ne.s32.totalorder %s248, %s264
      %p266 = scmp.eq.s32.totalorder %s33, 0
      %p267 = por %p265, %p266
      %s268 = ssub.s32 %s34, %s53
      %s269 = ssub.s32 %s35, %s49
      %s270 = sor.u32 %s268, %s269
      %s271 = ssub.s32 %s36, %s45
      %s272 = sor.u32 %s270, %s271
      %p273 = scmp.eq.s32.totalorder %s272, 0
      %s275 = sadd.s32 %s274, 1
      %s276 = scalar_select %p273, %s274, %s275
      %p279 = pneg %p273
      %p280 = scmp.eq.s32.totalorder %s27, 1
      %p281 = por %p279, %p280
      %p282 = scmp.ne.s32.totalorder %s274, %s277
      %p283 = scmp.eq.s32.totalorder %s27, 0
      %p284 = por %p282, %p283
      %p285 = scmp.ne.s32.totalorder %s274, %s277
      %p286 = scmp.eq.s32.totalorder %s32, 1
      %p287 = por %p285, %p286
      %p288 = scmp.ne.s32.totalorder %s277, %s278
      %p289 = scmp.eq.s32.totalorder %s32, 0
      %p290 = por %p288, %p289
      %p291 = scmp.ne.s32.totalorder %s277, %s278
      %p292 = scmp.eq.s32.totalorder %s33, 1
      %p293 = por %p291, %p292
      %p295 = scmp.ne.s32.totalorder %s278, %s294
      %p296 = scmp.eq.s32.totalorder %s33, 0
      %p297 = por %p295, %p296
      %s298 = ssub.s32 %s34, %s53
      %s299 = ssub.s32 %s35, %s49
      %s300 = sor.u32 %s298, %s299
      %s301 = ssub.s32 %s36, %s45
      %s302 = sor.u32 %s300, %s301
      %p303 = scmp.eq.s32.totalorder %s302, 0
      %s305 = sadd.s32 %s304, 1
      %s306 = scalar_select %p303, %s304, %s305
      %p309 = pneg %p303
      %p310 = scmp.eq.s32.totalorder %s27, 1
      %p311 = por %p309, %p310
      %p312 = scmp.ne.s32.totalorder %s304, %s307
      %p313 = scmp.eq.s32.totalorder %s27, 0
      %p314 = por %p312, %p313
      %p315 = scmp.ne.s32.totalorder %s304, %s307
      %p316 = scmp.eq.s32.totalorder %s32, 1
      %p317 = por %p315, %p316
      %p318 = scmp.ne.s32.totalorder %s307, %s308
      %p319 = scmp.eq.s32.totalorder %s32, 0
      %p320 = por %p318, %p319
      %p321 = scmp.ne.s32.totalorder %s307, %s308
      %p322 = scmp.eq.s32.totalorder %s33, 1
      %p323 = por %p321, %p322
      %p325 = scmp.ne.s32.totalorder %s308, %s324
      %p326 = scmp.eq.s32.totalorder %s33, 0
      %p327 = por %p325, %p326
      %p328 = scmp.le.s32.totalorder 1, %s27
      %p329 = scmp.lt.s32.totalorder %s27, 3
      %p330 = pnand %p328, %p329
      %p331 = pneg %p330
      // Predicated region
      $region9: #{tpu_custom_call.1} parent=5 // pred_check
        _
      $region10: #{tpu_custom_call.1} parent=5 // pred_check_branch
        %333 = sbr.rel (%p330) target = $region12
      $region11: #{tpu_custom_call.1} parent=5 // pred_region
        %s334 = ssub.s32 %s27, 1
        // Predicated region
        $region13: #{tpu_custom_call.1} parent=11 // pred_check
          %p335 = pneg %p100
        $region14: #{tpu_custom_call.1} parent=11 // pred_check_branch
          %337 = sbr.rel (%p335) target = $region16
        $region15: #{tpu_custom_call.1} parent=11 // pred_region
          %s339 = ssub.s32 256, 256
          %340 = vsyncadd [#allocation6], %s339
          %s341 = smul.addr %s39, 64
          %s342 = scalar_lea.hbm %s1, %s341
          %s343 = sshll.u32 [#allocation5], 4
          %s344 = int_to_ptr.vmem [resolvable:$true] %s343
          %349 = dma.hbm_to_vmem [thread:$0]  %s342, 256, %s344, [#allocation6], 64, 64, 4
        $region16: #{tpu_custom_call.1} parent=11 // pred_fallthru
          _
        // Predicated region
        $region17: #{tpu_custom_call.1} parent=11 // pred_check
          %p350 = pneg %p126
        $region18: #{tpu_custom_call.1} parent=11 // pred_check_branch
          %352 = sbr.rel (%p350) target = $region20
        $region19: #{tpu_custom_call.1} parent=11 // pred_region
          %s354 = ssub.s32 256, 256
          %355 = vsyncadd [#allocation6], %s354
          %s356 = smul.addr %s39, 64
          %s357 = scalar_lea.hbm %s2, %s356
          %s358 = sshll.u32 [#allocation7], 4
          %s359 = int_to_ptr.vmem [resolvable:$true] %s358
          %364 = dma.hbm_to_vmem [thread:$0]  %s357, 256, %s359, [#allocation6], 64, 64, 4
        $region20: #{tpu_custom_call.1} parent=11 // pred_fallthru
          _
        // Predicated region
        $region21: #{tpu_custom_call.1} parent=11 // pred_check
          %p365 = pneg %p152
        $region22: #{tpu_custom_call.1} parent=11 // pred_check_branch
          %367 = sbr.rel (%p365) target = $region24
        $region23: #{tpu_custom_call.1} parent=11 // pred_region
          %s369 = ssub.s32 256, 256
          %370 = vsyncadd [#allocation9], %s369
          %s371 = smul.addr %s39, 64
          %s372 = scalar_lea.hbm %s3, %s371
          %s373 = sshll.u32 [#allocation8], 4
          %s374 = int_to_ptr.vmem [resolvable:$true] %s373
          %379 = dma.hbm_to_vmem [thread:$0]  %s372, 256, %s374, [#allocation9], 64, 64, 4
        $region24: #{tpu_custom_call.1} parent=11 // pred_fallthru
          _
        // Predicated region
        $region25: #{tpu_custom_call.1} parent=11 // pred_check
          %p380 = pneg %p178
        $region26: #{tpu_custom_call.1} parent=11 // pred_check_branch
          %382 = sbr.rel (%p380) target = $region28
        $region27: #{tpu_custom_call.1} parent=11 // pred_region
          %p383 = scmp.lt.s32.totalorder %s39, 0
          %s384 = scalar_select %p383, %s39, 0
          %s385 = scalar_lea.vmem %s4, %s384
        $region28: #{tpu_custom_call.1} parent=11 // pred_fallthru
          _
        // Predicated region
        $region29: #{tpu_custom_call.1} parent=11 // pred_check
          %p386 = pneg %p204
        $region30: #{tpu_custom_call.1} parent=11 // pred_check_branch
          %388 = sbr.rel (%p386) target = $region32
        $region31: #{tpu_custom_call.1} parent=11 // pred_region
          %p389 = scmp.lt.s32.totalorder %s39, 0
          %s390 = scalar_select %p389, %s39, 0
          %s391 = scalar_lea.vmem %s5, %s390
        $region32: #{tpu_custom_call.1} parent=11 // pred_fallthru
          _
        // Predicated region
        $region33: #{tpu_custom_call.1} parent=11 // pred_check
          %p392 = pneg %p230
        $region34: #{tpu_custom_call.1} parent=11 // pred_check_branch
          %394 = sbr.rel (%p392) target = $region36
        $region35: #{tpu_custom_call.1} parent=11 // pred_region
          %p395 = scmp.lt.s32.totalorder %s39, 0
          %s396 = scalar_select %p395, %s39, 0
          %s397 = scalar_lea.vmem %s6, %s396
        $region36: #{tpu_custom_call.1} parent=11 // pred_fallthru
          _
      $region12: #{tpu_custom_call.1} parent=5 // pred_fallthru
        _
      %p398 = scmp.lt.s32.totalorder %s27, 2
      // Predicated region
      $region37: #{tpu_custom_call.1} parent=5 // pred_check
        %p399 = pneg %p398
      $region38: #{tpu_custom_call.1} parent=5 // pred_check_branch
        %401 = sbr.rel (%p399) target = $region40
      $region39: #{tpu_custom_call.1} parent=5 // pred_region
        // Predicated region
        $region41: #{tpu_custom_call.1} parent=39 // pred_check
          %p402 = pneg %p68
        $region42: #{tpu_custom_call.1} parent=39 // pred_check_branch
          %404 = sbr.rel (%p402) target = $region44
        $region43: #{tpu_custom_call.1} parent=39 // pred_region
          %s405 = sand.u32 %s58, 1
          %s406 = scalar_lea.sflag [#allocation3], %s405
          %s407 = sand.u32 %s58, 1
          %s408 = smul.addr %s407, 8
          %s409 = scalar_lea.vmem [#allocation2], %s408
          %s411 = ssub.s32 128, 128
          %412 = vsyncadd %s406, %s411
          %s413 = sadd.s32 %s35, %s34
          %s414 = smul.addr %s413, 128
          %s415 = scalar_lea.hbm %s0, %s414
          %s417 = sshll.u32 %s409, 4
          %s418 = int_to_ptr.vmem [resolvable:$true] %s417
          %420 = dma.hbm_to_vmem [thread:$0]  %s415, 128, %s418, %s406
        $region44: #{tpu_custom_call.1} parent=39 // pred_fallthru
          _
      $region40: #{tpu_custom_call.1} parent=5 // pred_fallthru
        _
      %p421 = scmp.le.s32.totalorder 1, %s27
      %p422 = scmp.lt.s32.totalorder %s27, 3
      %p423 = pnand %p421, %p422
      %p424 = pneg %p423
      // Predicated region
      $region45: #{tpu_custom_call.1} parent=5 // pred_check
        _
      $region46: #{tpu_custom_call.1} parent=5 // pred_check_branch
        %426 = sbr.rel (%p423) target = $region48
      $region47: #{tpu_custom_call.1} parent=5 // pred_region
        %s427 = ssub.s32 %s27, 1
        %s428 = sand.u32 %s61, 1
        %s429 = scalar_lea.sflag [#allocation3], %s428
        %s430 = sand.u32 %s61, 1
        %s431 = smul.addr %s430, 8
        %s432 = scalar_lea.vmem [#allocation2], %s431
        // Predicated region
        $region49: #{tpu_custom_call.1} parent=47 // pred_check
          %p433 = pneg %p74
        $region50: #{tpu_custom_call.1} parent=47 // pred_check_branch
          %435 = sbr.rel (%p433) target = $region52
        $region51: #{tpu_custom_call.1} parent=47 // pred_region
          %436 = dma.done %s429, 128
        $region52: #{tpu_custom_call.1} parent=47 // pred_fallthru
          _
        // Predicated region
        $region53: #{tpu_custom_call.1} parent=47 // pred_check
          %p437 = pneg %p100
        $region54: #{tpu_custom_call.1} parent=47 // pred_check_branch
          %439 = sbr.rel (%p437) target = $region56
        $region55: #{tpu_custom_call.1} parent=47 // pred_region
          %440 = dma.done [#allocation6], 256
        $region56: #{tpu_custom_call.1} parent=47 // pred_fallthru
          _
        // Predicated region
        $region57: #{tpu_custom_call.1} parent=47 // pred_check
          %p441 = pneg %p126
        $region58: #{tpu_custom_call.1} parent=47 // pred_check_branch
          %443 = sbr.rel (%p441) target = $region60
        $region59: #{tpu_custom_call.1} parent=47 // pred_region
          %444 = dma.done [#allocation6], 256
        $region60: #{tpu_custom_call.1} parent=47 // pred_fallthru
          _
        // Predicated region
        $region61: #{tpu_custom_call.1} parent=47 // pred_check
          %p445 = pneg %p152
        $region62: #{tpu_custom_call.1} parent=47 // pred_check_branch
          %447 = sbr.rel (%p445) target = $region64
        $region63: #{tpu_custom_call.1} parent=47 // pred_region
          %448 = dma.done [#allocation9], 256
        $region64: #{tpu_custom_call.1} parent=47 // pred_fallthru
          _
        %s449 = sand.u32 %s61, 1
        %s450 = scalar_lea.sflag [#allocation3], %s449
        %s451 = sand.u32 %s61, 1
        %s452 = smul.addr %s451, 8
        %s453 = scalar_lea.vmem [#allocation2], %s452
        %p454 = pneg %p74
        %p455 = pneg %p71
        %p456 = pneg %p100
        %p457 = pneg %p97
        %p458 = pneg %p126
        %p459 = pneg %p123
        %p460 = pneg %p152
        %p461 = pneg %p149
        %p462 = scmp.lt.s32.totalorder %s39, 0
        %s463 = scalar_select %p462, %s39, 0
        %s464 = scalar_lea.vmem %s4, %s463
        %p465 = pneg %p178
        %p466 = pneg %p175
        %p467 = scmp.lt.s32.totalorder %s39, 0
        %s468 = scalar_select %p467, %s39, 0
        %s469 = scalar_lea.vmem %s5, %s468
        %p470 = pneg %p204
        %p471 = pneg %p201
        %p472 = scmp.lt.s32.totalorder %s39, 0
        %s473 = scalar_select %p472, %s39, 0
        %s474 = scalar_lea.vmem %s6, %s473
        %p475 = pneg %p230
        %p476 = pneg %p227
        %p477 = pneg %p260
        %p478 = pneg %p257
        %s479 = sand.u32 %s247, 1
        %s480 = scalar_lea.sflag [#allocation4], %s479
        %s481 = sand.u32 %s247, 1
        %s482 = smul.addr %s481, 4
        %s483 = scalar_lea.vmem [#allocation10], %s482
        %p484 = pneg %p290
        %p485 = pneg %p287
        %s486 = sand.u32 %s32, 1
        %s487 = scalar_lea.sflag [#allocation12], %s486
        %s488 = sand.u32 %s277, 1
        %s489 = smul.addr %s488, 4
        %s490 = scalar_lea.vmem [#allocation11], %s489
        %p491 = pneg %p320
        %p492 = pneg %p317
        %s493 = sand.u32 %s32, 1
        %s494 = scalar_lea.sflag [#allocation12], %s493
        %s495 = sand.u32 %s307, 1
        %s496 = smul.addr %s495, 4
        %s497 = scalar_lea.vmem [#allocation13], %s496
        %p498 = scmp.lt.s32.totalorder %s39, 0
        %s499 = scalar_select %p498, %s39, 0
        %s500 = scalar_lea.vmem %s4, %s499
        %p501 = scmp.lt.s32.totalorder %s39, 0
        %s502 = scalar_select %p501, %s39, 0
        %s503 = scalar_lea.vmem %s5, %s502
        %p504 = scmp.lt.s32.totalorder %s39, 0
        %s505 = scalar_select %p504, %s39, 0
        %s506 = scalar_lea.vmem %s6, %s505
        %v508 = vld [vmem:[%s432] sm:$0xff]
        %v509 = vpack.c.bf16 %v508, %v508
        %v510 = vld [vmem:[#allocation5] sm:$0xf]
        %v511 = vld [vmem:[#allocation5 + $0x4] sm:$0xf]
        %v512 = vld [vmem:[#allocation5 + $0x8] sm:$0xf]
        %v513 = vld [vmem:[#allocation5 + $0xc] sm:$0xf]
        %v514 = vld [vmem:[%s500] sm:$0x1]
        %v516 = vlaneseq
        %v517 = vshrl.u32 %v516, 7
        %v518 = vsub.s32 0, %v517
        %v519 = vrot.slane %v514, %v518
        %v525 = vunpack.c.l.b16 %v510
        %v526 = vunpack.c.l.b16 %v511
        %v527 = vunpack.c.l.b16 %v512
        %v528 = vunpack.c.l.b16 %v513
        %v529 = vpack.c.b16 %v526, %v525
        %v530 = vpack.c.b16 %v528, %v527
        %vm533 = vcmask 261120
        %v535 = vsel %vm533, %v509, 0
        %537 = vmatprep.subr.bf16.mxu0 0
        %538 = vmatpush1.bf16.msra.mxu0 %v529
        %539 = vmatprep.subr.bf16.mxu0 0
        %540 = vmatpush1.bf16.msra.mxu0 %v530
        %541 = vmatprep.subr.bf16.mxu0 0
        %542 = vmatpush1.bf16.msra.mxu0 0
        %543 = vmatprep.subr.bf16.mxu0 0
        %544 = vmatpush1.bf16.msra.mxu0 0
        %545 = vmatprep.subr.bf16.mxu0 0
        %546 = vmatpush1.bf16.msra.mxu0 0
        %547 = vmatprep.subr.bf16.mxu0 0
        %548 = vmatpush1.bf16.msra.mxu0 0
        %549 = vmatprep.subr.bf16.mxu0 0
        %550 = vmatpush1.bf16.msra.mxu0 0
        %551 = vmatprep.subr.bf16.mxu0 0
        %552 = vmatpush1.bf16.msra.mxu0 0
        %553 = vmatprep.subr.bf16.mxu0 0
        %554 = vmatpush1.bf16.msra.mxu0 0
        %555 = vmatprep.subr.bf16.mxu0 0
        %556 = vmatpush1.bf16.msra.mxu0 0
        %557 = vmatprep.subr.bf16.mxu0 0
        %558 = vmatpush1.bf16.msra.mxu0 0
        %559 = vmatprep.subr.bf16.mxu0 0
        %560 = vmatpush1.bf16.msra.mxu0 0
        %561 = vmatprep.subr.bf16.mxu0 0
        %562 = vmatpush1.bf16.msra.mxu0 0
        %563 = vmatprep.subr.bf16.mxu0 0
        %564 = vmatpush1.bf16.msra.mxu0 0
        %565 = vmatprep.subr.bf16.mxu0 0
        %566 = vmatpush1.bf16.msra.mxu0 0
        %567 = vmatprep.subr.bf16.mxu0 0
        %568 = vmatpush1.bf16.msra.mxu0 0
        %569 = vmatprep.mubr.bf16.mxu0 0
        %570 = vmatmul.mubr.bf16.gmra.mrb[0].mxu0 %v535
        %v571 = vpop.f32.mrb[0].mxu0
        %v572 = vadd.f32 %v519, %v571
        %v573 = vpop.f32.mrb[0].mxu0
        %v574 = vpop.f32.mrb[0].mxu0
        %v575 = vpop.f32.mrb[0].mxu0
        %576 = vdwg.mxu0
        %v577 = vld [vmem:[#allocation7] sm:$0xf]
        %v578 = vld [vmem:[#allocation7 + $0x4] sm:$0xf]
        %v579 = vld [vmem:[#allocation7 + $0x8] sm:$0xf]
        %v580 = vld [vmem:[#allocation7 + $0xc] sm:$0xf]
        %v581 = vld [vmem:[%s503] sm:$0x1]
        %v583 = vlaneseq
        %v584 = vshrl.u32 %v583, 7
        %v585 = vsub.s32 0, %v584
        %v586 = vrot.slane %v581, %v585
        %v592 = vunpack.c.l.b16 %v577
        %v593 = vunpack.c.l.b16 %v578
        %v594 = vunpack.c.l.b16 %v579
        %v595 = vunpack.c.l.b16 %v580
        %v596 = vpack.c.b16 %v593, %v592
        %v597 = vpack.c.b16 %v595, %v594
        %600 = vmatprep.subr.bf16.mxu0 0
        %601 = vmatpush1.bf16.msra.mxu0 %v596
        %602 = vmatprep.subr.bf16.mxu0 0
        %603 = vmatpush1.bf16.msra.mxu0 %v597
        %604 = vmatprep.subr.bf16.mxu0 0
        %605 = vmatpush1.bf16.msra.mxu0 0
        %606 = vmatprep.subr.bf16.mxu0 0
        %607 = vmatpush1.bf16.msra.mxu0 0
        %608 = vmatprep.subr.bf16.mxu0 0
        %609 = vmatpush1.bf16.msra.mxu0 0
        %610 = vmatprep.subr.bf16.mxu0 0
        %611 = vmatpush1.bf16.msra.mxu0 0
        %612 = vmatprep.subr.bf16.mxu0 0
        %613 = vmatpush1.bf16.msra.mxu0 0
        %614 = vmatprep.subr.bf16.mxu0 0
        %615 = vmatpush1.bf16.msra.mxu0 0
        %616 = vmatprep.subr.bf16.mxu0 0
        %617 = vmatpush1.bf16.msra.mxu0 0
        %618 = vmatprep.subr.bf16.mxu0 0
        %619 = vmatpush1.bf16.msra.mxu0 0
        %620 = vmatprep.subr.bf16.mxu0 0
        %621 = vmatpush1.bf16.msra.mxu0 0
        %622 = vmatprep.subr.bf16.mxu0 0
        %623 = vmatpush1.bf16.msra.mxu0 0
        %624 = vmatprep.subr.bf16.mxu0 0
        %625 = vmatpush1.bf16.msra.mxu0 0
        %626 = vmatprep.subr.bf16.mxu0 0
        %627 = vmatpush1.bf16.msra.mxu0 0
        %628 = vmatprep.subr.bf16.mxu0 0
        %629 = vmatpush1.bf16.msra.mxu0 0
        %630 = vmatprep.subr.bf16.mxu0 0
        %631 = vmatpush1.bf16.msra.mxu0 0
        %632 = vmatprep.mubr.bf16.mxu0 0
        %633 = vmatmul.mubr.bf16.gmra.mrb[0].mxu0 %v535
        %v634 = vpop.f32.mrb[0].mxu0
        %v635 = vadd.f32 %v586, %v634
        %v636 = vpop.f32.mrb[0].mxu0
        %v637 = vpop.f32.mrb[0].mxu0
        %v638 = vpop.f32.mrb[0].mxu0
        %639 = vdwg.mxu0
        %v640 = vld [vmem:[#allocation8] sm:$0xf]
        %v641 = vld [vmem:[#allocation8 + $0x4] sm:$0xf]
        %v642 = vld [vmem:[#allocation8 + $0x8] sm:$0xf]
        %v643 = vld [vmem:[#allocation8 + $0xc] sm:$0xf]
        %v644 = vld [vmem:[%s506] sm:$0x1]
        %v646 = vlaneseq
        %v647 = vshrl.u32 %v646, 7
        %v648 = vsub.s32 0, %v647
        %v649 = vrot.slane %v644, %v648
        %v655 = vunpack.c.l.b16 %v640
        %v656 = vunpack.c.l.b16 %v641
        %v657 = vunpack.c.l.b16 %v642
        %v658 = vunpack.c.l.b16 %v643
        %v659 = vpack.c.b16 %v656, %v655
        %v660 = vpack.c.b16 %v658, %v657
        %663 = vmatprep.subr.bf16.mxu0 0
        %664 = vmatpush1.bf16.msra.mxu0 %v659
        %665 = vmatprep.subr.bf16.mxu0 0
        %666 = vmatpush1.bf16.msra.mxu0 %v660
        %667 = vmatprep.subr.bf16.mxu0 0
        %668 = vmatpush1.bf16.msra.mxu0 0
        %669 = vmatprep.subr.bf16.mxu0 0
        %670 = vmatpush1.bf16.msra.mxu0 0
        %671 = vmatprep.subr.bf16.mxu0 0
        %672 = vmatpush1.bf16.msra.mxu0 0
        %673 = vmatprep.subr.bf16.mxu0 0
        %674 = vmatpush1.bf16.msra.mxu0 0
        %675 = vmatprep.subr.bf16.mxu0 0
        %676 = vmatpush1.bf16.msra.mxu0 0
        %677 = vmatprep.subr.bf16.mxu0 0
        %678 = vmatpush1.bf16.msra.mxu0 0
        %679 = vmatprep.subr.bf16.mxu0 0
        %680 = vmatpush1.bf16.msra.mxu0 0
        %681 = vmatprep.subr.bf16.mxu0 0
        %682 = vmatpush1.bf16.msra.mxu0 0
        %683 = vmatprep.subr.bf16.mxu0 0
        %684 = vmatpush1.bf16.msra.mxu0 0
        %685 = vmatprep.subr.bf16.mxu0 0
        %686 = vmatpush1.bf16.msra.mxu0 0
        %687 = vmatprep.subr.bf16.mxu0 0
        %688 = vmatpush1.bf16.msra.mxu0 0
        %689 = vmatprep.subr.bf16.mxu0 0
        %690 = vmatpush1.bf16.msra.mxu0 0
        %691 = vmatprep.subr.bf16.mxu0 0
        %692 = vmatpush1.bf16.msra.mxu0 0
        %693 = vmatprep.subr.bf16.mxu0 0
        %694 = vmatpush1.bf16.msra.mxu0 0
        %695 = vmatprep.mubr.bf16.mxu0 0
        %696 = vmatmul.mubr.bf16.gmra.mrb[0].mxu0 %v535
        %v697 = vpop.f32.mrb[0].mxu0
        %v698 = vadd.f32 %v649, %v697
        %v699 = vpop.f32.mrb[0].mxu0
        %v700 = vpop.f32.mrb[0].mxu0
        %v701 = vpop.f32.mrb[0].mxu0
        %702 = vdwg.mxu0
        %v703 = vpack.c.bf16 %v572, %v572
        %vm704 = vcmask 257024
        %705 = vst.msk [vmem:[%s483] sm:$0xf] %vm704, %v703
        %v706 = vpack.c.bf16 %v635, %v635
        %707 = vst.msk [vmem:[%s490] sm:$0xf] %vm704, %v706
        %v708 = vpack.c.bf16 %v698, %v698
        %709 = vst.msk [vmem:[%s497] sm:$0xf] %vm704, %v708
        %s710 = sand.u32 %s247, 1
        %s711 = scalar_lea.sflag [#allocation4], %s710
        %s712 = sand.u32 %s247, 1
        %s713 = smul.addr %s712, 4
        %s714 = scalar_lea.vmem [#allocation10], %s713
        %s715 = sand.u32 %s32, 1
        %s716 = scalar_lea.sflag [#allocation12], %s715
        %s717 = sand.u32 %s277, 1
        %s718 = smul.addr %s717, 4
        %s719 = scalar_lea.vmem [#allocation11], %s718
        %s720 = sand.u32 %s32, 1
        %s721 = scalar_lea.sflag [#allocation12], %s720
        %s722 = sand.u32 %s307, 1
        %s723 = smul.addr %s722, 4
        %s724 = scalar_lea.vmem [#allocation13], %s723
        // Predicated region
        $region65: #{tpu_custom_call.1} parent=47 // pred_check
          %p725 = pneg %p257
        $region66: #{tpu_custom_call.1} parent=47 // pred_check_branch
          %727 = sbr.rel (%p725) target = $region68
        $region67: #{tpu_custom_call.1} parent=47 // pred_region
          %s729 = ssub.s32 64, 64
          %730 = vsyncadd %s711, %s729
          %s731 = sadd.s32 %s39, %s38
          %s732 = sadd.s32 %s731, %s37
          %s733 = smul.addr %s732, 64
          %s734 = scalar_lea.hbm %s7, %s733
          %s736 = sshll.u32 %s714, 4
          %s737 = int_to_ptr.vmem [resolvable:$true] %s736
          %739 = dma.vmem_to_hbm [thread:$0]  %s737, 64, %s734, %s711
        $region68: #{tpu_custom_call.1} parent=47 // pred_fallthru
          _
        // Predicated region
        $region69: #{tpu_custom_call.1} parent=47 // pred_check
          %p740 = pneg %p287
        $region70: #{tpu_custom_call.1} parent=47 // pred_check_branch
          %742 = sbr.rel (%p740) target = $region72
        $region71: #{tpu_custom_call.1} parent=47 // pred_region
          %s744 = ssub.s32 64, 64
          %745 = vsyncadd %s716, %s744
          %s746 = sadd.s32 %s39, %s38
          %s747 = sadd.s32 %s746, %s37
          %s748 = smul.addr %s747, 64
          %s749 = scalar_lea.hbm %s8, %s748
          %s751 = sshll.u32 %s719, 4
          %s752 = int_to_ptr.vmem [resolvable:$true] %s751
          %754 = dma.vmem_to_hbm [thread:$0]  %s752, 64, %s749, %s716
        $region72: #{tpu_custom_call.1} parent=47 // pred_fallthru
          _
        // Predicated region
        $region73: #{tpu_custom_call.1} parent=47 // pred_check
          %p755 = pneg %p317
        $region74: #{tpu_custom_call.1} parent=47 // pred_check_branch
          %757 = sbr.rel (%p755) target = $region76
        $region75: #{tpu_custom_call.1} parent=47 // pred_region
          %s759 = ssub.s32 64, 64
          %760 = vsyncadd %s721, %s759
          %s761 = sadd.s32 %s39, %s38
          %s762 = sadd.s32 %s761, %s37
          %s763 = smul.addr %s762, 64
          %s764 = scalar_lea.hbm %s9, %s763
          %s766 = sshll.u32 %s724, 4
          %s767 = int_to_ptr.vmem [resolvable:$true] %s766
          %769 = dma.vmem_to_hbm [thread:$0]  %s767, 64, %s764, %s721
        $region76: #{tpu_custom_call.1} parent=47 // pred_fallthru
          _
      $region48: #{tpu_custom_call.1} parent=5 // pred_fallthru
        _
      %p770 = scmp.le.s32.totalorder 2, %s27
      // Predicated region
      $region77: #{tpu_custom_call.1} parent=5 // pred_check
        %p771 = pneg %p770
      $region78: #{tpu_custom_call.1} parent=5 // pred_check_branch
        %773 = sbr.rel (%p771) target = $region80
      $region79: #{tpu_custom_call.1} parent=5 // pred_region
        %s774 = ssub.s32 %s27, 2
        // Predicated region
        $region81: #{tpu_custom_call.1} parent=79 // pred_check
          %p775 = pneg %p263
        $region82: #{tpu_custom_call.1} parent=79 // pred_check_branch
          %777 = sbr.rel (%p775) target = $region84
        $region83: #{tpu_custom_call.1} parent=79 // pred_region
          %s778 = sand.u32 %s248, 1
          %s779 = scalar_lea.sflag [#allocation4], %s778
          %s780 = sand.u32 %s248, 1
          %s781 = smul.addr %s780, 4
          %s782 = scalar_lea.vmem [#allocation10], %s781
          %783 = dma.done %s779, 64
        $region84: #{tpu_custom_call.1} parent=79 // pred_fallthru
          _
        // Predicated region
        $region85: #{tpu_custom_call.1} parent=79 // pred_check
          %p784 = pneg %p293
        $region86: #{tpu_custom_call.1} parent=79 // pred_check_branch
          %786 = sbr.rel (%p784) target = $region88
        $region87: #{tpu_custom_call.1} parent=79 // pred_region
          %s787 = sand.u32 %s33, 1
          %s788 = scalar_lea.sflag [#allocation12], %s787
          %s789 = sand.u32 %s278, 1
          %s790 = smul.addr %s789, 4
          %s791 = scalar_lea.vmem [#allocation11], %s790
          %792 = dma.done %s788, 64
        $region88: #{tpu_custom_call.1} parent=79 // pred_fallthru
          _
        // Predicated region
        $region89: #{tpu_custom_call.1} parent=79 // pred_check
          %p793 = pneg %p323
        $region90: #{tpu_custom_call.1} parent=79 // pred_check_branch
          %795 = sbr.rel (%p793) target = $region92
        $region91: #{tpu_custom_call.1} parent=79 // pred_region
          %s796 = sand.u32 %s33, 1
          %s797 = scalar_lea.sflag [#allocation12], %s796
          %s798 = sand.u32 %s308, 1
          %s799 = smul.addr %s798, 4
          %s800 = scalar_lea.vmem [#allocation13], %s799
          %801 = dma.done %s797, 64
        $region92: #{tpu_custom_call.1} parent=79 // pred_fallthru
          _
      $region80: #{tpu_custom_call.1} parent=5 // pred_fallthru
        _
    $region6: #{tpu_custom_call.1} parent=1 // loop_footer
      %s31 = sadd.s32 1, %s27
    $region7: #{tpu_custom_call.1} parent=1 // loop_footer_branch
      %26 = sbr.rel target = $region3
    $region8: #{tpu_custom_call.1} parent=1 // loop_exit
      _
    %802 = vsyncpa [#allocation3], 1
    %s803 = scalar_lea.sflag [#allocation3], 1
    %804 = vsyncpa %s803, 1
    %805 = vsyncpa [#allocation6], 1
    %806 = vsyncpa [#allocation9], 1
    %807 = vsyncpa [#allocation4], 1
    %s808 = scalar_lea.sflag [#allocation4], 1
    %809 = vsyncpa %s808, 1
    %810 = vsyncpa [#allocation12], 1
    %s811 = scalar_lea.sflag [#allocation12], 1
    %812 = vsyncpa %s811, 1

</llo_original>
